<compile_context>
chip_gen: v6e
topology: v6e:2x2x1
jax: 0.10.0
libtpu: 0.0.40
codegen_flags: <defaults>
</compile_context>

<pallas_src>
import functools

import jax
import jax.numpy as jnp
from jax.experimental import pallas as pl
from jax.experimental.pallas import tpu as pltpu


# ---------------------------------------------------------------------------
# Tiling helpers
# ---------------------------------------------------------------------------
def _vmem_capacity_bytes():
    try:
        return int(pltpu.get_tpu_info().vmem_capacity_bytes)
    except Exception:
        return 64 << 20  # v7x, the tightest generation


def _pick_block(n, target, step):
    """Largest divisor of n that is a multiple of `step` and <= target.
    Falls back to n itself (full dimension) if no such divisor exists."""
    target = min(target, n)
    best = 0
    d = step
    while d <= target:
        if n % d == 0:
            best = d
        d += step
    return best if best else n


def _vmem_estimate(tm, tk, f_in, out_cols, out_itemsize):
    return (2 * tm * tk * 2            # A_hat tile, double-buffered bf16
            + 2 * tk * f_in * 2        # h tile, double-buffered bf16
            + 2 * tm * out_cols * out_itemsize   # output tile, double-buffered
            + tm * f_in * 4)           # f32 accumulator scratch


def _tile_plan(n, f_in, out_cols, out_itemsize, vmem_capacity):
    """Pick (tm, tk): tm multiple of 8 (sublane), tk multiple of 128 (lane)."""
    budget = max(int(vmem_capacity * 0.4), 4 << 20)
    tm_t, tk_t = 512, 2048
    while True:
        tm = _pick_block(n, tm_t, 8)
        tk = _pick_block(n, tk_t, 128)
        if _vmem_estimate(tm, tk, f_in, out_cols, out_itemsize) <= budget:
            break
        if tk_t > 128:
            tk_t //= 2
        elif tm_t > 8:
            tm_t //= 2
        else:
            # TODO(synk): pad N when it has no usable divisors at large scale.
            break
    # v7x has 2 TensorCores: prefer >= 2 independent row blocks when legal.
    if n // tm < 2:
        tm_half = _pick_block(n, max(tm // 2, 8), 8)
        if n // tm_half >= 2:
            tm = tm_half
    return tm, tk


# ---------------------------------------------------------------------------
# Pallas kernel: one GCN layer (optionally fused with Linear + log_softmax)
# ---------------------------------------------------------------------------
def make_layer_kernel(*, is_final, c_valid):
    """Kernel refs:
      a_ref (tm,tk) bf16, h_ref (tk,f_in) bf16, w_ref (f_in,f_out) f32,
      b_ref (1,f_out) f32, [wl_ref (f_out,c_pad) f32, bl_ref (1,c_pad) f32],
      o_ref, acc_ref (tm,f_in) f32 scratch.
    Accumulates A@h across the K grid axis; finalizes at the last K step."""

    def kernel(a_ref, h_ref, w_ref, b_ref, *rest):
        if is_final:
            wl_ref, bl_ref, o_ref, acc_ref = rest
        else:
            o_ref, acc_ref = rest

        k = pl.program_id(1)

        @pl.when(k == 0)
        def _():
            acc_ref[...] = jnp.zeros_like(acc_ref)

        # N^2-sized matmul: bf16 operands, f32 accumulation in VMEM scratch.
        acc_ref[...] += jnp.dot(a_ref[...], h_ref[...],
                                preferred_element_type=jnp.float32)

        @pl.when(k == pl.num_programs(1) - 1)
        def _():
            agg = acc_ref[...]                                  # f32 (tm,f_in)
            hid = jnp.dot(agg, w_ref[...],
                          preferred_element_type=jnp.float32) + b_ref[...]
            hid = jnp.maximum(hid, 0.0)          # ReLU; Dropout (eval) = id
            if is_final:
                logits = jnp.dot(hid, wl_ref[...],
                                 preferred_element_type=jnp.float32)
                logits = logits + bl_ref[...]
                # Mask the zero-padded class columns before log_softmax.
                col = jax.lax.broadcasted_iota(jnp.int32, logits.shape, 1)
                logits = jnp.where(col < c_valid, logits, -1e30)
                mx = jnp.max(logits, axis=-1, keepdims=True)
                s = logits - mx
                lse = jnp.log(jnp.sum(jnp.exp(s), axis=-1, keepdims=True))
                o_ref[...] = (s - lse).astype(o_ref.dtype)
            else:
                o_ref[...] = hid.astype(o_ref.dtype)

    return kernel


def _gcn_layer_call(a_bf, h_bf, w, b, wl_pad, bl_pad, *, is_final, c_valid):
    """Run one GCN layer (and, if is_final, the fused Linear + log_softmax)."""
    n = a_bf.shape[0]
    f_in = h_bf.shape[1]
    f_out = w.shape[1]
    if is_final:
        out_cols, out_dtype, out_itemsize = wl_pad.shape[1], jnp.float32, 4
    else:
        out_cols, out_dtype, out_itemsize = f_out, jnp.bfloat16, 2

    vmem_cap = _vmem_capacity_bytes()
    tm, tk = _tile_plan(n, f_in, out_cols, out_itemsize, vmem_cap)
    grid = (n // tm, n // tk)
    row_blocks = grid[0]

    inputs = [a_bf, h_bf,
              w.astype(jnp.float32),
              b.reshape(1, -1).astype(jnp.float32)]
    in_specs = [
        pl.BlockSpec((tm, tk), lambda i, k: (i, k)),       # A_hat tile
        pl.BlockSpec((tk, f_in), lambda i, k: (k, 0)),     # h tile
        pl.BlockSpec((f_in, f_out), lambda i, k: (0, 0)),  # W (full, small)
        pl.BlockSpec((1, f_out), lambda i, k: (0, 0)),     # bias
    ]
    if is_final:
        inputs += [wl_pad, bl_pad]
        in_specs += [
            pl.BlockSpec(wl_pad.shape, lambda i, k: (0, 0)),
            pl.BlockSpec((1, wl_pad.shape[1]), lambda i, k: (0, 0)),
        ]

    # Explicit scoped-VMEM limit sized from the chosen buffers (+ headroom).
    weight_bytes = 2 * (f_in * f_out * 4 + f_out * 4)
    if is_final:
        weight_bytes += 2 * (f_out * out_cols * 4 + out_cols * 4)
    need = _vmem_estimate(tm, tk, f_in, out_cols, out_itemsize) + weight_bytes
    vmem_limit = int(min(vmem_cap, max(32 << 20, 2 * need + (4 << 20))))

    flops = 2 * n * n * f_in + 2 * n * f_in * f_out
    transcendentals = 0
    if is_final:
        flops += 2 * n * f_out * out_cols
        transcendentals = n * out_cols
    bytes_accessed = (n * n * 2 + row_blocks * n * f_in * 2
                      + f_in * f_out * 4 + n * out_cols * out_itemsize)
    cost = pl.CostEstimate(flops=int(flops),
                           transcendentals=int(transcendentals),
                           bytes_accessed=int(bytes_accessed))

    return pl.pallas_call(
        make_layer_kernel(is_final=is_final, c_valid=c_valid),
        out_shape=jax.ShapeDtypeStruct((n, out_cols), out_dtype),
        grid=grid,
        in_specs=in_specs,
        out_specs=pl.BlockSpec((tm, out_cols), lambda i, k: (i, 0)),
        scratch_shapes=[pltpu.VMEM((tm, f_in), jnp.float32)],
        compiler_params=pltpu.CompilerParams(
            dimension_semantics=("parallel", "arbitrary"),
            vmem_limit_bytes=vmem_limit),
        cost_estimate=cost,
    )(*inputs)


# ---------------------------------------------------------------------------
# Forward pass driver
# ---------------------------------------------------------------------------
def gcn_fa_forward(params, x, a_hat_bf16):
    """Full GCN_FA forward; returns log-probabilities (N, C) in f32."""
    gcn_params = params["gcn"]
    w_lin, b_lin = params["linear"]          # w_lin already [in, out]
    c = int(w_lin.shape[1])
    n_gcn = len(gcn_params)
    if n_gcn == 0:
        raise NotImplementedError("GCN_FA with an empty hidden list is not supported")

    # Pad the class dim to a lane-dense 128 multiple (zero weights / zero bias).
    c_pad = ((c + 127) // 128) * 128
    wl_pad = jnp.zeros((int(w_lin.shape[0]), c_pad), jnp.float32).at[:, :c].set(
        w_lin.astype(jnp.float32))
    bl_pad = jnp.zeros((1, c_pad), jnp.float32).at[0, :c].set(
        b_lin.astype(jnp.float32))

    h = x.astype(jnp.bfloat16)
    for li, (w, b) in enumerate(gcn_params):
        is_final = (li == n_gcn - 1)
        h = _gcn_layer_call(a_hat_bf16, h, w, b,
                            wl_pad if is_final else None,
                            bl_pad if is_final else None,
                            is_final=is_final, c_valid=c)
    return h[:, :c]                           # drop padded class columns


# ---------------------------------------------------------------------------
# Plain-JAX glue: GCN normalization (dense A_hat), parameter setup, reference
# ---------------------------------------------------------------------------
def build_normalized_adjacency(edge_index, edge_weight, num_nodes,
                               dtype=jnp.bfloat16):
    """Dense D^-1/2 (A + I) D^-1/2, A_hat[dst, src] = norm (PyG convention).
    Scatter-adds directly into `dtype` so the N^2 matrix hits HBM only once."""
    src, dst = edge_index[0], edge_index[1]
    loop_idx = jnp.arange(num_nodes, dtype=src.dtype)
    src = jnp.concatenate([src, loop_idx])
    dst = jnp.concatenate([dst, loop_idx])
    w = jnp.concatenate([edge_weight.astype(jnp.float32),
                         jnp.ones((num_nodes,), jnp.float32)])
    deg = jnp.zeros((num_nodes,), jnp.float32).at[dst].add(w)
    deg_inv_sqrt = jnp.where(deg > 0.0, jax.lax.rsqrt(deg), 0.0)
    norm = deg_inv_sqrt[src] * w * deg_inv_sqrt[dst]
    a_hat = jnp.zeros((num_nodes, num_nodes), dtype=dtype)
    return a_hat.at[dst, src].add(norm.astype(dtype))


def reference_forward(params, x, a_hat_f32):
    """Pure-JAX f32 reference of the PyTorch forward (eval mode)."""
    h = x
    for w, b in params["gcn"]:
        h = jax.nn.relu(a_hat_f32 @ (h @ w) + b)
    w_lin, b_lin = params["linear"]
    return jax.nn.log_softmax(h @ w_lin + b_lin, axis=1)


def glorot(key, shape):
    fan_in, fan_out = shape[0], shape[1]
    limit = jnp.sqrt(6.0 / (fan_in + fan_out))
    return jax.random.uniform(key, shape, jnp.float32, -limit, limit)


# ---------------------------------------------------------------------------
# Example run
# ---------------------------------------------------------------------------
if __name__ == "__main__":
    key = jax.random.PRNGKey(0)

    # Small synthetic "dataset": N nodes, F input features, hidden=[64], C classes.
    N, F_IN, HIDDEN, C = 64, 16, [64], 8
    E = 256

    k_x, k_ei, k_ew, k_w0, k_wl, k_bl = jax.random.split(key, 6)

    x = jax.random.normal(k_x, (N, F_IN), jnp.float32)
    edge_index = jax.random.randint(k_ei, (2, E), 0, N, dtype=jnp.int32)
    edge_attr = jax.random.uniform(k_ew, (E,), jnp.float32, 0.1, 1.0)

    # Kernel consumes bf16 A_hat (built once, directly in bf16).
    a_hat_bf = build_normalized_adjacency(edge_index, edge_attr, N,
                                          dtype=jnp.bfloat16)

    # Deterministic parameters (glorot GCN weights, zero GCN bias, glorot-ish Linear).
    dims = [F_IN] + HIDDEN + [C]
    gcn_params = []
    wk = k_w0
    for fin, fout in zip(dims[:-2], dims[1:-1]):
        wk, sub = jax.random.split(wk)
        gcn_params.append((glorot(sub, (fin, fout)),
                           jnp.zeros((fout,), jnp.float32)))
    w_lin = glorot(k_wl, (dims[-2], dims[-1]))          # already [in, out]
    b_lin = jax.random.uniform(k_bl, (dims[-1],), jnp.float32, -0.1, 0.1)

    params = {"gcn": gcn_params, "linear": (w_lin, b_lin)}

    fwd = jax.jit(functools.partial(gcn_fa_forward, params))
    out = jax.block_until_ready(fwd(x, a_hat_bf))

    # Sanity: shape, log_softmax rows sum to 1 in prob space, and agreement
    # with an f32 pure-JAX reference (bf16 A_hat/h -> loose tolerance).
    assert out.shape == (N, C)
    assert jnp.allclose(jnp.sum(jnp.exp(out), axis=1), 1.0, atol=1e-3)
    a_hat_f32 = build_normalized_adjacency(edge_index, edge_attr, N,
                                           dtype=jnp.float32)
    ref = reference_forward(params, x, a_hat_f32)
    assert float(jnp.max(jnp.abs(out - ref))) < 0.15

    print("KERNEL_OK")
</pallas_src>

<mosaic_0001>
module attributes {stable_mosaic.version = 11 : i64} {
  func.func @kernel(%arg0: i32, %arg1: i32, %arg2: memref<32x64xbf16, #tpu.memory_space<vmem>>, %arg3: memref<64x16xbf16, #tpu.memory_space<vmem>>, %arg4: memref<16x64xf32, #tpu.memory_space<vmem>>, %arg5: memref<1x64xf32, #tpu.memory_space<vmem>>, %arg6: memref<64x128xf32, #tpu.memory_space<vmem>>, %arg7: memref<1x128xf32, #tpu.memory_space<vmem>>, %arg8: memref<32x128xf32, #tpu.memory_space<vmem>>, %arg9: memref<32x16xf32, #tpu.memory_space<vmem>>) attributes {dimension_semantics = [#tpu.dimension_semantics<parallel>, #tpu.dimension_semantics<arbitrary>], iteration_bounds = array<i64: 2, 1>, scalar_prefetch = 0 : i64, scratch_operands = 1 : i64, tpu.core_type = #tpu.core_type<tc>, window_params = [{transform_indices = @transform_0, window_bounds = array<i64: 32, 64>}, {transform_indices = @transform_1, window_bounds = array<i64: 64, 16>}, {pipeline_mode = #tpu.pipeline_mode<synchronous>, transform_indices = @transform_2, window_bounds = array<i64: 16, 64>}, {pipeline_mode = #tpu.pipeline_mode<synchronous>, transform_indices = @transform_3, window_bounds = array<i64: 1, 64>}, {pipeline_mode = #tpu.pipeline_mode<synchronous>, transform_indices = @transform_4, window_bounds = array<i64: 64, 128>}, {pipeline_mode = #tpu.pipeline_mode<synchronous>, transform_indices = @transform_5, window_bounds = array<i64: 1, 128>}, {transform_indices = @transform_6, window_bounds = array<i64: 32, 128>}]} {
    %c0_i32 = arith.constant 0 : i32
    %0 = arith.cmpi eq, %arg1, %c0_i32 : i32
    %1 = arith.extui %0 : i1 to i32
    %c0_i32_0 = arith.constant 0 : i32
    %2 = arith.cmpi ne, %1, %c0_i32_0 : i32
    scf.if %2 {
      %cst_10 = arith.constant 0.000000e+00 : f32
      %12 = vector.broadcast %cst_10 : f32 to vector<32x16xf32>
      %c0_11 = arith.constant 0 : index
      %c0_12 = arith.constant 0 : index
      %13 = vector.load %arg9[%c0_11, %c0_12] : memref<32x16xf32, #tpu.memory_space<vmem>>, vector<32x16xf32>
      tpu.vector_store %arg9[%c0_11, %c0_12], %12 {strides = array<i32>} : memref<32x16xf32, #tpu.memory_space<vmem>>, vector<32x16xf32>,
    } else {
    }
    %c0 = arith.constant 0 : index
    %c0_1 = arith.constant 0 : index
    %3 = vector.load %arg9[%c0, %c0_1] : memref<32x16xf32, #tpu.memory_space<vmem>>, vector<32x16xf32>
    %c0_2 = arith.constant 0 : index
    %c0_3 = arith.constant 0 : index
    %4 = vector.load %arg2[%c0_2, %c0_3] : memref<32x64xbf16, #tpu.memory_space<vmem>>, vector<32x64xbf16>
    %c0_4 = arith.constant 0 : index
    %c0_5 = arith.constant 0 : index
    %5 = vector.load %arg3[%c0_4, %c0_5] : memref<64x16xbf16, #tpu.memory_space<vmem>>, vector<64x16xbf16>
    %cst = arith.constant dense<0.000000e+00> : vector<32x16xf32>
    %6 = tpu.matmul %4, %5, %cst {dimension_numbers = #tpu.dot_dimension_numbers<[1], [0], [0], [1], [0, 0, 1, 1], [], []>} : vector<32x64xbf16>, vector<64x16xbf16>, vector<32x16xf32> -> vector<32x16xf32>
    %7 = arith.addf %3, %6 : vector<32x16xf32>
    %c0_6 = arith.constant 0 : index
    %c0_7 = arith.constant 0 : index
    %8 = vector.load %arg9[%c0_6, %c0_7] : memref<32x16xf32, #tpu.memory_space<vmem>>, vector<32x16xf32>
    tpu.vector_store %arg9[%c0_6, %c0_7], %7 {strides = array<i32>} : memref<32x16xf32, #tpu.memory_space<vmem>>, vector<32x16xf32>,
    %c0_i32_8 = arith.constant 0 : i32
    %9 = arith.cmpi eq, %arg1, %c0_i32_8 : i32
    %10 = arith.extui %9 : i1 to i32
    %c0_i32_9 = arith.constant 0 : i32
    %11 = arith.cmpi ne, %10, %c0_i32_9 : i32
    scf.if %11 {
      %c0_10 = arith.constant 0 : index
      %c0_11 = arith.constant 0 : index
      %12 = vector.load %arg9[%c0_10, %c0_11] : memref<32x16xf32, #tpu.memory_space<vmem>>, vector<32x16xf32>
      %c0_12 = arith.constant 0 : index
      %c0_13 = arith.constant 0 : index
      %13 = vector.load %arg4[%c0_12, %c0_13] : memref<16x64xf32, #tpu.memory_space<vmem>>, vector<16x64xf32>
      %cst_14 = arith.constant dense<0.000000e+00> : vector<32x64xf32>
      %14 = tpu.matmul %12, %13, %cst_14 {dimension_numbers = #tpu.dot_dimension_numbers<[1], [0], [0], [1], [0, 0, 1, 1], [], []>} : vector<32x16xf32>, vector<16x64xf32>, vector<32x64xf32> -> vector<32x64xf32>
      %c0_15 = arith.constant 0 : index
      %c0_16 = arith.constant 0 : index
      %15 = vector.load %arg5[%c0_15, %c0_16] : memref<1x64xf32, #tpu.memory_space<vmem>>, vector<1x64xf32>
      %16 = vector.broadcast %15 : vector<1x64xf32> to vector<32x64xf32>
      %17 = arith.addf %14, %16 : vector<32x64xf32>
      %cst_17 = arith.constant 0.000000e+00 : f32
      %18 = vector.broadcast %cst_17 : f32 to vector<32x64xf32>
      %19 = arith.maximumf %17, %18 : vector<32x64xf32>
      %c0_18 = arith.constant 0 : index
      %c0_19 = arith.constant 0 : index
      %20 = vector.load %arg6[%c0_18, %c0_19] : memref<64x128xf32, #tpu.memory_space<vmem>>, vector<64x128xf32>
      %cst_20 = arith.constant dense<0.000000e+00> : vector<32x128xf32>
      %21 = tpu.matmul %19, %20, %cst_20 {dimension_numbers = #tpu.dot_dimension_numbers<[1], [0], [0], [1], [0, 0, 1, 1], [], []>} : vector<32x64xf32>, vector<64x128xf32>, vector<32x128xf32> -> vector<32x128xf32>
      %c0_21 = arith.constant 0 : index
      %c0_22 = arith.constant 0 : index
      %22 = vector.load %arg7[%c0_21, %c0_22] : memref<1x128xf32, #tpu.memory_space<vmem>>, vector<1x128xf32>
      %23 = vector.broadcast %22 : vector<1x128xf32> to vector<32x128xf32>
      %24 = arith.addf %21, %23 : vector<32x128xf32>
      %25 = tpu.iota {dimensions = array<i32: 1>} : vector<32x128xi32>
      %c8_i32 = arith.constant 8 : i32
      %26 = vector.broadcast %c8_i32 : i32 to vector<32x128xi32>
      %27 = arith.cmpi slt, %25, %26 : vector<32x128xi32>
      %cst_23 = arith.constant -1.000000e+30 : f32
      %28 = vector.broadcast %cst_23 : f32 to vector<32x128xf32>
      %29 = arith.select %27, %24, %28 : vector<32x128xi1>, vector<32x128xf32>
      %cst_24 = arith.constant dense<0xFF800000> : vector<32xf32>
      %30 = vector.multi_reduction <maximumf>, %29, %cst_24 [1] : vector<32x128xf32> to vector<32xf32>
      %31 = vector.shape_cast %30 : vector<32xf32> to vector<32x1xf32>
      %32 = vector.broadcast %31 : vector<32x1xf32> to vector<32x128xf32>
      %33 = arith.subf %29, %32 : vector<32x128xf32>
      %34 = math.exp %33 : vector<32x128xf32>
      %cst_25 = arith.constant dense<0.000000e+00> : vector<32xf32>
      %35 = vector.multi_reduction <add>, %34, %cst_25 [1] : vector<32x128xf32> to vector<32xf32>
      %36 = vector.shape_cast %35 : vector<32xf32> to vector<32x1xf32>
      %37 = math.log %36 : vector<32x1xf32>
      %38 = vector.broadcast %37 : vector<32x1xf32> to vector<32x128xf32>
      %39 = arith.subf %33, %38 : vector<32x128xf32>
      %c0_26 = arith.constant 0 : index
      %c0_27 = arith.constant 0 : index
      %40 = vector.load %arg8[%c0_26, %c0_27] : memref<32x128xf32, #tpu.memory_space<vmem>>, vector<32x128xf32>
      tpu.vector_store %arg8[%c0_26, %c0_27], %39 {strides = array<i32>} : memref<32x128xf32, #tpu.memory_space<vmem>>, vector<32x128xf32>,
    } else {
    }
    return
  }
  func.func @transform_0(%arg0: i32, %arg1: i32) -> (i32, i32) {
    %c0_i32 = arith.constant 0 : i32
    return %arg0, %arg1 : i32, i32
  }
  func.func @transform_1(%arg0: i32, %arg1: i32) -> (i32, i32) {
    %c0_i32 = arith.constant 0 : i32
    %c0_i32_0 = arith.constant 0 : i32
    return %arg1, %c0_i32 : i32, i32
  }
  func.func @transform_2(%arg0: i32, %arg1: i32) -> (i32, i32) {
    %c0_i32 = arith.constant 0 : i32
    %c0_i32_0 = arith.constant 0 : i32
    %c0_i32_1 = arith.constant 0 : i32
    return %c0_i32, %c0_i32_0 : i32, i32
  }
  func.func @transform_3(%arg0: i32, %arg1: i32) -> (i32, i32) {
    %c0_i32 = arith.constant 0 : i32
    %c0_i32_0 = arith.constant 0 : i32
    %c0_i32_1 = arith.constant 0 : i32
    return %c0_i32, %c0_i32_0 : i32, i32
  }
  func.func @transform_4(%arg0: i32, %arg1: i32) -> (i32, i32) {
    %c0_i32 = arith.constant 0 : i32
    %c0_i32_0 = arith.constant 0 : i32
    %c0_i32_1 = arith.constant 0 : i32
    return %c0_i32, %c0_i32_0 : i32, i32
  }
  func.func @transform_5(%arg0: i32, %arg1: i32) -> (i32, i32) {
    %c0_i32 = arith.constant 0 : i32
    %c0_i32_0 = arith.constant 0 : i32
    %c0_i32_1 = arith.constant 0 : i32
    return %c0_i32, %c0_i32_0 : i32, i32
  }
  func.func @transform_6(%arg0: i32, %arg1: i32) -> (i32, i32) {
    %c0_i32 = arith.constant 0 : i32
    %c0_i32_0 = arith.constant 0 : i32
    return %arg0, %c0_i32 : i32, i32
  }
}

</mosaic_0001>

<llo_original>
// kernel: gcn_fa_forward.1
$region0: #{gcn_fa_forward.1}
  #allocation0 [shape = 'u32[]', space=smem, size = 0x4, offset = 0x4, fixed_abs, tag = 'smem constant byte address 0x4 - core index']
  #allocation1 [shape = 'u32[144,128]{1,0:T(1,128)}', space=vmem, size = 0x12000, scoped, tag = 'internal scratch']
  #allocation2 [shape = 'f32[32,16]{1,0:T(8,128)}', space=vmem, size = 0x4000, scoped, tag = 'scratch operand']
  %s0 = inlined_call_operand.vmem [shape: bf16[64,64], index: 0, kind: input, shape index: {}]
  %s1 = inlined_call_operand.vmem [shape: bf16[64,16], index: 1, kind: input, shape index: {}]
  %s2 = inlined_call_operand.vmem [shape: f32[16,64], index: 2, kind: input, shape index: {}]
  %s3 = inlined_call_operand.vmem [shape: f32[1,64], index: 3, kind: input, shape index: {}]
  %s4 = inlined_call_operand.vmem [shape: f32[64,128], index: 4, kind: input, shape index: {}]
  %s5 = inlined_call_operand.vmem [shape: f32[1,128], index: 5, kind: input, shape index: {}]
  %s6 = inlined_call_operand.vmem [shape: f32[64,128], index: 6, kind: output, shape index: {}]
  %s7 = sld [smem:[#allocation0]]
  $region65: #{gcn_fa_forward.1} parent=0
    _
  %s9 = ssub.s32 1, %s7
  %s10 = scalar_select 0, %s9, %s7
  loop: start=0, step=1, limit=4
  $region2: #{gcn_fa_forward.1} parent=0 // loop_pre_header
    _
  $region3: #{gcn_fa_forward.1} parent=0 // loop_header
    %s12 = sphi 0, %s16
    %p13 = scmp.ge.s32.totalorder %s12, 4
    %s19 = sphi 0, %s31
    %s20 = sphi 0, %s27
    %s21 = sphi 0, %s19
    %s22 = sphi 0, %s20
    %s23 = sphi 0, %s21
    %s24 = sphi 0, %s22
    %s36 = sphi 0, %s38
    %s39 = sphi 0, %s36
    %s40 = sphi 0, %s39
    %s56 = sphi 0, %s40
    %s62 = sphi 0, %s64
    %s65 = sphi 0, %s62
    %s66 = sphi 0, %s65
    %s82 = sphi 0, %s66
    %s86 = sphi 0, %s86
    %s88 = sphi 0, %s86
    %s89 = sphi 0, %s88
    %s103 = sphi 0, %s89
    %s107 = sphi 0, %s107
    %s109 = sphi 0, %s107
    %s110 = sphi 0, %s109
    %s124 = sphi 0, %s110
    %s128 = sphi 0, %s128
    %s130 = sphi 0, %s128
    %s131 = sphi 0, %s130
    %s145 = sphi 0, %s131
    %s149 = sphi 0, %s149
    %s151 = sphi 0, %s149
    %s152 = sphi 0, %s151
    %s166 = sphi 0, %s152
    %s172 = sphi 0, %s174
    %s175 = sphi 0, %s172
    %s176 = sphi 0, %s175
    %s192 = sphi 0, %s176
  $region4: #{gcn_fa_forward.1} parent=0 // loop_header_branch
    %15 = sbr.rel (%p13) target = $region8
  $region5: #{gcn_fa_forward.1} parent=0 // loop_body
    %s17 = ssub.s32 %s12, 1
    %s18 = ssub.s32 %s12, 2
    %s25 = sadd.s32 1, %s20
    %p26 = scmp.ge.s32.totalorder %s25, 1
    %s27 = scalar_select %p26, 0, %s25
    %s28 = sadd.s32 1, %s19
    %s29 = scalar_select %p26, %s28, %s19
    %p30 = scmp.ge.s32.totalorder %s29, 2
    %s31 = scalar_select %p30, 0, %s29
    %s32 = ssub.s32 %s19, %s31
    %s33 = ssub.s32 %s20, %s27
    %s34 = sor.u32 %s32, %s33
    %p35 = scmp.eq.s32.totalorder %s34, 0
    %s37 = sadd.s32 %s36, 1
    %s38 = scalar_select %p35, %s36, %s37
    %p41 = pneg %p35
    %p42 = scmp.eq.s32.totalorder %s12, 1
    %p43 = por %p41, %p42
    %p44 = scmp.ne.s32.totalorder %s36, %s39
    %p45 = scmp.eq.s32.totalorder %s12, 0
    %p46 = por %p44, %p45
    %p47 = scmp.ne.s32.totalorder %s36, %s39
    %p48 = scmp.eq.s32.totalorder %s17, 1
    %p49 = por %p47, %p48
    %p50 = scmp.ne.s32.totalorder %s39, %s40
    %p51 = scmp.eq.s32.totalorder %s17, 0
    %p52 = por %p50, %p51
    %p53 = scmp.ne.s32.totalorder %s39, %s40
    %p54 = scmp.eq.s32.totalorder %s18, 1
    %p55 = por %p53, %p54
    %p57 = scmp.ne.s32.totalorder %s40, %s56
    %p58 = scmp.eq.s32.totalorder %s18, 0
    %p59 = por %p57, %p58
    %s60 = ssub.s32 %s20, %s27
    %p61 = scmp.eq.s32.totalorder %s60, 0
    %s63 = sadd.s32 %s62, 1
    %s64 = scalar_select %p61, %s62, %s63
    %p67 = pneg %p61
    %p68 = scmp.eq.s32.totalorder %s12, 1
    %p69 = por %p67, %p68
    %p70 = scmp.ne.s32.totalorder %s62, %s65
    %p71 = scmp.eq.s32.totalorder %s12, 0
    %p72 = por %p70, %p71
    %p73 = scmp.ne.s32.totalorder %s62, %s65
    %p74 = scmp.eq.s32.totalorder %s17, 1
    %p75 = por %p73, %p74
    %p76 = scmp.ne.s32.totalorder %s65, %s66
    %p77 = scmp.eq.s32.totalorder %s17, 0
    %p78 = por %p76, %p77
    %p79 = scmp.ne.s32.totalorder %s65, %s66
    %p80 = scmp.eq.s32.totalorder %s18, 1
    %p81 = por %p79, %p80
    %p83 = scmp.ne.s32.totalorder %s66, %s82
    %p84 = scmp.eq.s32.totalorder %s18, 0
    %p85 = por %p83, %p84
    %s87 = sadd.s32 %s86, 1
    %p90 = scmp.eq.s32.totalorder %s12, 1
    %p91 = scmp.ne.s32.totalorder %s86, %s88
    %p92 = scmp.eq.s32.totalorder %s12, 0
    %p93 = por %p91, %p92
    %p94 = scmp.ne.s32.totalorder %s86, %s88
    %p95 = scmp.eq.s32.totalorder %s17, 1
    %p96 = por %p94, %p95
    %p97 = scmp.ne.s32.totalorder %s88, %s89
    %p98 = scmp.eq.s32.totalorder %s17, 0
    %p99 = por %p97, %p98
    %p100 = scmp.ne.s32.totalorder %s88, %s89
    %p101 = scmp.eq.s32.totalorder %s18, 1
    %p102 = por %p100, %p101
    %p104 = scmp.ne.s32.totalorder %s89, %s103
    %p105 = scmp.eq.s32.totalorder %s18, 0
    %p106 = por %p104, %p105
    %s108 = sadd.s32 %s107, 1
    %p111 = scmp.eq.s32.totalorder %s12, 1
    %p112 = scmp.ne.s32.totalorder %s107, %s109
    %p113 = scmp.eq.s32.totalorder %s12, 0
    %p114 = por %p112, %p113
    %p115 = scmp.ne.s32.totalorder %s107, %s109
    %p116 = scmp.eq.s32.totalorder %s17, 1
    %p117 = por %p115, %p116
    %p118 = scmp.ne.s32.totalorder %s109, %s110
    %p119 = scmp.eq.s32.totalorder %s17, 0
    %p120 = por %p118, %p119
    %p121 = scmp.ne.s32.totalorder %s109, %s110
    %p122 = scmp.eq.s32.totalorder %s18, 1
    %p123 = por %p121, %p122
    %p125 = scmp.ne.s32.totalorder %s110, %s124
    %p126 = scmp.eq.s32.totalorder %s18, 0
    %p127 = por %p125, %p126
    %s129 = sadd.s32 %s128, 1
    %p132 = scmp.eq.s32.totalorder %s12, 1
    %p133 = scmp.ne.s32.totalorder %s128, %s130
    %p134 = scmp.eq.s32.totalorder %s12, 0
    %p135 = por %p133, %p134
    %p136 = scmp.ne.s32.totalorder %s128, %s130
    %p137 = scmp.eq.s32.totalorder %s17, 1
    %p138 = por %p136, %p137
    %p139 = scmp.ne.s32.totalorder %s130, %s131
    %p140 = scmp.eq.s32.totalorder %s17, 0
    %p141 = por %p139, %p140
    %p142 = scmp.ne.s32.totalorder %s130, %s131
    %p143 = scmp.eq.s32.totalorder %s18, 1
    %p144 = por %p142, %p143
    %p146 = scmp.ne.s32.totalorder %s131, %s145
    %p147 = scmp.eq.s32.totalorder %s18, 0
    %p148 = por %p146, %p147
    %s150 = sadd.s32 %s149, 1
    %p153 = scmp.eq.s32.totalorder %s12, 1
    %p154 = scmp.ne.s32.totalorder %s149, %s151
    %p155 = scmp.eq.s32.totalorder %s12, 0
    %p156 = por %p154, %p155
    %p157 = scmp.ne.s32.totalorder %s149, %s151
    %p158 = scmp.eq.s32.totalorder %s17, 1
    %p159 = por %p157, %p158
    %p160 = scmp.ne.s32.totalorder %s151, %s152
    %p161 = scmp.eq.s32.totalorder %s17, 0
    %p162 = por %p160, %p161
    %p163 = scmp.ne.s32.totalorder %s151, %s152
    %p164 = scmp.eq.s32.totalorder %s18, 1
    %p165 = por %p163, %p164
    %p167 = scmp.ne.s32.totalorder %s152, %s166
    %p168 = scmp.eq.s32.totalorder %s18, 0
    %p169 = por %p167, %p168
    %s170 = ssub.s32 %s19, %s31
    %p171 = scmp.eq.s32.totalorder %s170, 0
    %s173 = sadd.s32 %s172, 1
    %s174 = scalar_select %p171, %s172, %s173
    %p177 = pneg %p171
    %p178 = scmp.eq.s32.totalorder %s12, 1
    %p179 = por %p177, %p178
    %p180 = scmp.ne.s32.totalorder %s172, %s175
    %p181 = scmp.eq.s32.totalorder %s12, 0
    %p182 = por %p180, %p181
    %p183 = scmp.ne.s32.totalorder %s172, %s175
    %p184 = scmp.eq.s32.totalorder %s17, 1
    %p185 = por %p183, %p184
    %p186 = scmp.ne.s32.totalorder %s175, %s176
    %p187 = scmp.eq.s32.totalorder %s17, 0
    %p188 = por %p186, %p187
    %p189 = scmp.ne.s32.totalorder %s175, %s176
    %p190 = scmp.eq.s32.totalorder %s18, 1
    %p191 = por %p189, %p190
    %p193 = scmp.ne.s32.totalorder %s176, %s192
    %p194 = scmp.eq.s32.totalorder %s18, 0
    %p195 = por %p193, %p194
    %p196 = scmp.le.s32.totalorder 1, %s12
    %p197 = scmp.lt.s32.totalorder %s12, 3
    %p198 = pnand %p196, %p197
    %p199 = pneg %p198
    // Predicated region
    $region9: #{gcn_fa_forward.1} parent=5 // pred_check
      _
    $region10: #{gcn_fa_forward.1} parent=5 // pred_check_branch
      %201 = sbr.rel (%p198) target = $region12
    $region11: #{gcn_fa_forward.1} parent=5 // pred_region
      %s202 = ssub.s32 %s12, 1
      // Predicated region
      $region13: #{gcn_fa_forward.1} parent=11 // pred_check
        %p203 = pneg %p78
      $region14: #{gcn_fa_forward.1} parent=11 // pred_check_branch
        %205 = sbr.rel (%p203) target = $region16
      $region15: #{gcn_fa_forward.1} parent=11 // pred_region
        %s206 = smul.u32 8, %s22
        %p207 = scmp.lt.s32.totalorder %s206, 7
        %s208 = scalar_select %p207, %s206, 7
        %s209 = smul.addr %s208, 4
        %s210 = scalar_lea.vmem %s1, %s209
        %s211 = smul.u32 8, %s22
      $region16: #{gcn_fa_forward.1} parent=11 // pred_fallthru
        _
      // Predicated region
      $region17: #{gcn_fa_forward.1} parent=11 // pred_check
        %p212 = pneg %p99
      $region18: #{gcn_fa_forward.1} parent=11 // pred_check_branch
        %214 = sbr.rel (%p212) target = $region20
      $region19: #{gcn_fa_forward.1} parent=11 // pred_region
        _
      $region20: #{gcn_fa_forward.1} parent=11 // pred_fallthru
        _
      // Predicated region
      $region21: #{gcn_fa_forward.1} parent=11 // pred_check
        %p215 = pneg %p120
      $region22: #{gcn_fa_forward.1} parent=11 // pred_check_branch
        %217 = sbr.rel (%p215) target = $region24
      $region23: #{gcn_fa_forward.1} parent=11 // pred_region
        _
      $region24: #{gcn_fa_forward.1} parent=11 // pred_fallthru
        _
      // Predicated region
      $region25: #{gcn_fa_forward.1} parent=11 // pred_check
        %p218 = pneg %p141
      $region26: #{gcn_fa_forward.1} parent=11 // pred_check_branch
        %220 = sbr.rel (%p218) target = $region28
      $region27: #{gcn_fa_forward.1} parent=11 // pred_region
        _
      $region28: #{gcn_fa_forward.1} parent=11 // pred_fallthru
        _
      // Predicated region
      $region29: #{gcn_fa_forward.1} parent=11 // pred_check
        %p221 = pneg %p162
      $region30: #{gcn_fa_forward.1} parent=11 // pred_check_branch
        %223 = sbr.rel (%p221) target = $region32
      $region31: #{gcn_fa_forward.1} parent=11 // pred_region
        _
      $region32: #{gcn_fa_forward.1} parent=11 // pred_fallthru
        _
    $region12: #{gcn_fa_forward.1} parent=5 // pred_fallthru
      _
    %p224 = scmp.lt.s32.totalorder %s12, 2
    // Predicated region
    $region33: #{gcn_fa_forward.1} parent=5 // pred_check
      %p225 = pneg %p224
    $region34: #{gcn_fa_forward.1} parent=5 // pred_check_branch
      %227 = sbr.rel (%p225) target = $region36
    $region35: #{gcn_fa_forward.1} parent=5 // pred_region
      // Predicated region
      $region37: #{gcn_fa_forward.1} parent=35 // pred_check
        %p228 = pneg %p46
      $region38: #{gcn_fa_forward.1} parent=35 // pred_check_branch
        %230 = sbr.rel (%p228) target = $region40
      $region39: #{gcn_fa_forward.1} parent=35 // pred_region
        %s231 = smul.u32 4, %s19
        %p232 = scmp.lt.s32.totalorder %s231, 7
        %s233 = scalar_select %p232, %s231, 7
        %p234 = scmp.lt.s32.totalorder %s20, 0
        %s235 = scalar_select %p234, %s20, 0
        %s236 = sadd.s32 %s235, %s233
        %s237 = smul.addr %s236, 4
        %s238 = scalar_lea.vmem %s0, %s237
        %s239 = smul.u32 4, %s19
      $region40: #{gcn_fa_forward.1} parent=35 // pred_fallthru
        _
    $region36: #{gcn_fa_forward.1} parent=5 // pred_fallthru
      _
    %p240 = scmp.le.s32.totalorder 1, %s12
    %p241 = scmp.lt.s32.totalorder %s12, 3
    %p242 = pnand %p240, %p241
    %p243 = pneg %p242
    // Predicated region
    $region41: #{gcn_fa_forward.1} parent=5 // pred_check
      _
    $region42: #{gcn_fa_forward.1} parent=5 // pred_check_branch
      %245 = sbr.rel (%p242) target = $region44
    $region43: #{gcn_fa_forward.1} parent=5 // pred_region
      %s246 = ssub.s32 %s12, 1
      %s247 = smul.u32 4, %s21
      %p248 = scmp.lt.s32.totalorder %s247, 7
      %s249 = scalar_select %p248, %s247, 7
      %p250 = scmp.lt.s32.totalorder %s22, 0
      %s251 = scalar_select %p250, %s22, 0
      %s252 = sadd.s32 %s251, %s249
      %s253 = smul.addr %s252, 4
      %s254 = scalar_lea.vmem %s0, %s253
      %p255 = pneg %p52
      %p256 = pneg %p49
      %s257 = smul.u32 8, %s22
      %p258 = scmp.lt.s32.totalorder %s257, 7
      %s259 = scalar_select %p258, %s257, 7
      %s260 = smul.addr %s259, 4
      %s261 = scalar_lea.vmem %s1, %s260
      %p262 = pneg %p78
      %p263 = pneg %p75
      %p264 = pneg %p99
      %p265 = pneg %p96
      %p266 = pneg %p120
      %p267 = pneg %p117
      %p268 = pneg %p141
      %p269 = pneg %p138
      %p270 = pneg %p162
      %p271 = pneg %p159
      %p272 = pneg %p188
      %p273 = pneg %p185
      %s274 = smul.u32 4, %s21
      %p275 = scmp.lt.s32.totalorder %s274, 7
      %s276 = scalar_select %p275, %s274, 7
      %s277 = smul.addr %s276, 8
      %s278 = scalar_lea.vmem %s6, %s277
      %s279 = smul.u32 4, %s21
      %p280 = scmp.lt.s32.totalorder %s279, 7
      %s281 = scalar_select %p280, %s279, 7
      %p282 = scmp.lt.s32.totalorder %s22, 0
      %s283 = scalar_select %p282, %s22, 0
      %s284 = sadd.s32 %s283, %s281
      %s285 = smul.addr %s284, 4
      %s286 = scalar_lea.vmem %s0, %s285
      %s287 = smul.u32 4, %s21
      %s288 = smul.u32 8, %s22
      %p289 = scmp.lt.s32.totalorder %s288, 7
      %s290 = scalar_select %p289, %s288, 7
      %s291 = smul.addr %s290, 4
      %s292 = scalar_lea.vmem %s1, %s291
      %s293 = smul.u32 8, %s22
      %s294 = smul.u32 4, %s21
      %p295 = scmp.lt.s32.totalorder %s294, 7
      %s296 = scalar_select %p295, %s294, 7
      %s297 = smul.addr %s296, 8
      %s298 = scalar_lea.vmem %s6, %s297
      %s299 = smul.u32 4, %s21
      %p301 = scmp.eq.s32.totalorder %s22, 0
      // Predicated region
      $region45: #{gcn_fa_forward.1} parent=43 // pred_check
        %p302 = pneg %p301
      $region46: #{gcn_fa_forward.1} parent=43 // pred_check_branch
        %304 = sbr.rel (%p302) target = $region48
      $region47: #{gcn_fa_forward.1} parent=43 // pred_region
        %vm305 = vcmask 130048
        %306 = vst.msk [vmem:[#allocation2] sm:$0xff] %vm305, 0.0
        %307 = vst.msk [vmem:[#allocation2 + $0x8] sm:$0xff] %vm305, 0.0
        %308 = vst.msk [vmem:[#allocation2 + $0x10] sm:$0xff] %vm305, 0.0
        %309 = vst.msk [vmem:[#allocation2 + $0x18] sm:$0xff] %vm305, 0.0
      $region48: #{gcn_fa_forward.1} parent=43 // pred_fallthru
        _
      %v310 = vld [vmem:[#allocation2] sm:$0xff]
      %v311 = vld [vmem:[#allocation2 + $0x8] sm:$0xff]
      %v312 = vld [vmem:[#allocation2 + $0x10] sm:$0xff]
      %v313 = vld [vmem:[#allocation2 + $0x18] sm:$0xff]
      %v314 = vld [vmem:[%s286] sm:$0xf]
      %v315 = vld [vmem:[%s286 + $0x4] sm:$0xf]
      %v316 = vld [vmem:[%s286 + $0x8] sm:$0xf]
      %v317 = vld [vmem:[%s286 + $0xc] sm:$0xf]
      %v318 = vld [vmem:[%s292] sm:$0xf]
      %v319 = vld [vmem:[%s292 + $0x4] sm:$0xf]
      %v320 = vld [vmem:[%s292 + $0x8] sm:$0xf]
      %v321 = vld [vmem:[%s292 + $0xc] sm:$0xf]
      %v322 = vld [vmem:[%s292 + $0x10] sm:$0xf]
      %v323 = vld [vmem:[%s292 + $0x14] sm:$0xf]
      %v324 = vld [vmem:[%s292 + $0x18] sm:$0xf]
      %v325 = vld [vmem:[%s292 + $0x1c] sm:$0xf]
      %v330 = vunpack.c.l.b16 %v314
      %v331 = vunpack.c.l.b16 %v315
      %v332 = vunpack.c.l.b16 %v316
      %v333 = vunpack.c.l.b16 %v317
      %v334 = vpack.c.b16 %v331, %v330
      %v335 = vpack.c.b16 %v333, %v332
      %v344 = vunpack.c.l.b16 %v318
      %v345 = vunpack.c.l.b16 %v319
      %v346 = vunpack.c.l.b16 %v320
      %v347 = vunpack.c.l.b16 %v321
      %v348 = vunpack.c.l.b16 %v322
      %v349 = vunpack.c.l.b16 %v323
      %v350 = vunpack.c.l.b16 %v324
      %v351 = vunpack.c.l.b16 %v325
      %v352 = vpack.c.b16 %v345, %v344
      %v353 = vpack.c.b16 %v347, %v346
      %v354 = vpack.c.b16 %v349, %v348
      %v355 = vpack.c.b16 %v351, %v350
      %vm360 = vcmask 523264
      %v362 = vsel %vm360, %v334, 0
      %v365 = vsel %vm360, %v335, 0
      %367 = vmatprep.subr.bf16.mxu0 0
      %368 = vmatpush1.bf16.msra.mxu0 0
      %369 = vmatprep.subr.bf16.mxu0 0
      %370 = vmatpush1.bf16.msra.mxu0 0
      %371 = vmatprep.subr.bf16.mxu0 0
      %372 = vmatpush1.bf16.msra.mxu0 0
      %373 = vmatprep.subr.bf16.mxu0 0
      %374 = vmatpush1.bf16.msra.mxu0 0
      %375 = vmatprep.subr.bf16.mxu0 0
      %376 = vmatpush1.bf16.msra.mxu0 %v355
      %377 = vmatprep.subr.bf16.mxu0 0
      %378 = vmatpush1.bf16.msra.mxu0 %v354
      %379 = vmatprep.subr.bf16.mxu0 0
      %380 = vmatpush1.bf16.msra.mxu0 %v353
      %381 = vmatprep.subr.bf16.mxu0 0
      %382 = vmatpush1.bf16.msra.mxu0 %v352
      %383 = vmatprep.subr.bf16.mxu0 0
      %384 = vmatpush2.bf16.msra.mxu0 0
      %385 = vmatprep.subr.bf16.mxu0 0
      %386 = vmatpush2.bf16.msra.mxu0 0
      %387 = vmatprep.subr.bf16.mxu0 0
      %388 = vmatpush2.bf16.msra.mxu0 0
      %389 = vmatprep.subr.bf16.mxu0 0
      %390 = vmatpush2.bf16.msra.mxu0 0
      %391 = vmatprep.subr.bf16.mxu0 0
      %392 = vmatpush2.bf16.msra.mxu0 0
      %393 = vmatprep.subr.bf16.mxu0 0
      %394 = vmatpush2.bf16.msra.mxu0 0
      %395 = vmatprep.subr.bf16.mxu0 0
      %396 = vmatpush2.bf16.msra.mxu0 0
      %397 = vmatprep.subr.bf16.mxu0 0
      %398 = vmatpush2.bf16.msra.mxu0 0
      %399 = vmatprep.mubr.bf16.mxu0 0
      %400 = vmatmul.mubr.bf16.gmra.mxu0 %v362
      %v401 = vpop.f32.mrf.mxu0
      %v402 = vadd.f32 0.0, %v401
      %v403 = vpop.f32.mrf.mxu0
      %v404 = vpop.f32.mrf.mxu0
      %v405 = vadd.f32 0.0, %v404
      %v406 = vpop.f32.mrf.mxu0
      %407 = vmatprep.mubr.bf16.mxu0 0
      %408 = vmatmul.mubr.bf16.gmra.mxu0 %v365
      %v409 = vpop.f32.mrf.mxu0
      %v410 = vadd.f32 0.0, %v409
      %v411 = vpop.f32.mrf.mxu0
      %v412 = vpop.f32.mrf.mxu0
      %v413 = vadd.f32 0.0, %v412
      %v414 = vpop.f32.mrf.mxu0
      %415 = vdwg.mxu0
      %v416 = vadd.f32 %v310, %v402
      %v417 = vadd.f32 %v311, %v405
      %v418 = vadd.f32 %v312, %v410
      %v419 = vadd.f32 %v313, %v413
      %vm420 = vcmask 130048
      %421 = vst.msk [vmem:[#allocation2] sm:$0xff] %vm420, %v416
      %422 = vst.msk [vmem:[#allocation2 + $0x8] sm:$0xff] %vm420, %v417
      %423 = vst.msk [vmem:[#allocation2 + $0x10] sm:$0xff] %vm420, %v418
      %424 = vst.msk [vmem:[#allocation2 + $0x18] sm:$0xff] %vm420, %v419
      // Predicated region
      $region49: #{gcn_fa_forward.1} parent=43 // pred_check
        %p425 = pneg %p301
      $region50: #{gcn_fa_forward.1} parent=43 // pred_check_branch
        %427 = sbr.rel (%p425) target = $region52
      $region51: #{gcn_fa_forward.1} parent=43 // pred_region
        %v428 = vld [vmem:[#allocation2] sm:$0xff]
        %v429 = vld [vmem:[#allocation2 + $0x8] sm:$0xff]
        %v430 = vld [vmem:[#allocation2 + $0x10] sm:$0xff]
        %v431 = vld [vmem:[#allocation2 + $0x18] sm:$0xff]
        %v432 = vld [vmem:[%s2] sm:$0xff]
        %v433 = vld [vmem:[%s2 + $0x8] sm:$0xff]
        %v434 = vld [vmem:[%s3] sm:$0x1]
        %v436 = vlaneseq
        %v437 = vshrl.u32 %v436, 7
        %v438 = vsub.s32 0, %v437
        %v439 = vrot.slane %v434, %v438
        %v442 = vsel %vm420, %v428, 0
        %v445 = vsel %vm420, %v429, 0
        %v448 = vsel %vm420, %v430, 0
        %v451 = vsel %vm420, %v431, 0
        %453 = vmatprep.subr.mxu0 0.0
        %454 = vmatpush1.msra.mxu0 0.0
        %455 = vmatprep.subr.mxu0 0.0
        %456 = vmatpush1.msra.mxu0 0.0
        %457 = vmatprep.subr.mxu0 0.0
        %458 = vmatpush1.msra.mxu0 0.0
        %459 = vmatprep.subr.mxu0 0.0
        %460 = vmatpush1.msra.mxu0 0.0
        %461 = vmatprep.subr.mxu0 0.0
        %462 = vmatpush1.msra.mxu0 0.0
        %463 = vmatprep.subr.mxu0 0.0
        %464 = vmatpush1.msra.mxu0 0.0
        %465 = vmatprep.subr.mxu0 0.0
        %466 = vmatpush1.msra.mxu0 0.0
        %467 = vmatprep.subr.mxu0 0.0
        %468 = vmatpush1.msra.mxu0 0.0
        %469 = vmatprep.subr.mxu0 0.0
        %470 = vmatpush1.msra.mxu0 0.0
        %471 = vmatprep.subr.mxu0 0.0
        %472 = vmatpush1.msra.mxu0 0.0
        %473 = vmatprep.subr.mxu0 0.0
        %474 = vmatpush1.msra.mxu0 0.0
        %475 = vmatprep.subr.mxu0 0.0
        %476 = vmatpush1.msra.mxu0 0.0
        %477 = vmatprep.subr.mxu0 0.0
        %478 = vmatpush1.msra.mxu0 0.0
        %479 = vmatprep.subr.mxu0 0.0
        %480 = vmatpush1.msra.mxu0 0.0
        %481 = vmatprep.subr.mxu0 0.0
        %482 = vmatpush1.msra.mxu0 %v433
        %483 = vmatprep.subr.mxu0 0.0
        %484 = vmatpush1.msra.mxu0 %v432
        %485 = vmatprep.subr.mxu0 0.0
        %486 = vmatpush2.msra.mxu0 0.0
        %487 = vmatprep.subr.mxu0 0.0
        %488 = vmatpush2.msra.mxu0 0.0
        %489 = vmatprep.subr.mxu0 0.0
        %490 = vmatpush2.msra.mxu0 0.0
        %491 = vmatprep.subr.mxu0 0.0
        %492 = vmatpush2.msra.mxu0 0.0
        %493 = vmatprep.subr.mxu0 0.0
        %494 = vmatpush2.msra.mxu0 0.0
        %495 = vmatprep.subr.mxu0 0.0
        %496 = vmatpush2.msra.mxu0 0.0
        %497 = vmatprep.subr.mxu0 0.0
        %498 = vmatpush2.msra.mxu0 0.0
        %499 = vmatprep.subr.mxu0 0.0
        %500 = vmatpush2.msra.mxu0 0.0
        %501 = vmatprep.subr.mxu0 0.0
        %502 = vmatpush2.msra.mxu0 0.0
        %503 = vmatprep.subr.mxu0 0.0
        %504 = vmatpush2.msra.mxu0 0.0
        %505 = vmatprep.subr.mxu0 0.0
        %506 = vmatpush2.msra.mxu0 0.0
        %507 = vmatprep.subr.mxu0 0.0
        %508 = vmatpush2.msra.mxu0 0.0
        %509 = vmatprep.subr.mxu0 0.0
        %510 = vmatpush2.msra.mxu0 0.0
        %511 = vmatprep.subr.mxu0 0.0
        %512 = vmatpush2.msra.mxu0 0.0
        %513 = vmatprep.subr.mxu0 0.0
        %514 = vmatpush2.msra.mxu0 0.0
        %515 = vmatprep.subr.mxu0 0.0
        %516 = vmatpush2.msra.mxu0 0.0
        %517 = vmatprep.mubr.f32.mxu0 0.0
        %518 = vmatmul.mubr.f32.gmra.mxu0 %v442
        %v519 = vpop.f32.mrf.mxu0
        %v520 = vadd.f32 %v439, %v519
        %v521 = vpop.f32.mrf.mxu0
        %522 = vmatprep.mubr.f32.mxu0 0.0
        %523 = vmatmul.mubr.f32.gmra.mxu0 %v445
        %v524 = vpop.f32.mrf.mxu0
        %v525 = vadd.f32 %v439, %v524
        %v526 = vpop.f32.mrf.mxu0
        %527 = vmatprep.mubr.f32.mxu0 0.0
        %528 = vmatmul.mubr.f32.gmra.mxu0 %v448
        %v529 = vpop.f32.mrf.mxu0
        %v530 = vadd.f32 %v439, %v529
        %v531 = vpop.f32.mrf.mxu0
        %532 = vmatprep.mubr.f32.mxu0 0.0
        %533 = vmatmul.mubr.f32.gmra.mxu0 %v451
        %v534 = vpop.f32.mrf.mxu0
        %v535 = vadd.f32 %v439, %v534
        %v536 = vpop.f32.mrf.mxu0
        %537 = vdwg.mxu0
        %v538 = vmax.f32 %v520, 0.0
        %v539 = vmax.f32 %v525, 0.0
        %v540 = vmax.f32 %v530, 0.0
        %v541 = vmax.f32 %v535, 0.0
        %v542 = vld [vmem:[%s4] sm:$0xff]
        %v543 = vld [vmem:[%s4 + $0x8] sm:$0xff]
        %v544 = vld [vmem:[%s4 + $0x10] sm:$0xff]
        %v545 = vld [vmem:[%s4 + $0x18] sm:$0xff]
        %v546 = vld [vmem:[%s4 + $0x20] sm:$0xff]
        %v547 = vld [vmem:[%s4 + $0x28] sm:$0xff]
        %v548 = vld [vmem:[%s4 + $0x30] sm:$0xff]
        %v549 = vld [vmem:[%s4 + $0x38] sm:$0xff]
        %v550 = vld [vmem:[%s5] sm:$0x1]
        %v552 = vlaneseq
        %v553 = vshrl.u32 %v552, 7
        %v554 = vsub.s32 0, %v553
        %v555 = vrot.slane %v550, %v554
        %v558 = vsel %vm360, %v538, 0
        %v561 = vsel %vm360, %v539, 0
        %v564 = vsel %vm360, %v540, 0
        %v567 = vsel %vm360, %v541, 0
        %569 = vmatprep.subr.mxu0 0.0
        %570 = vmatpush1.msra.mxu0 0.0
        %571 = vmatprep.subr.mxu0 0.0
        %572 = vmatpush1.msra.mxu0 0.0
        %573 = vmatprep.subr.mxu0 0.0
        %574 = vmatpush1.msra.mxu0 0.0
        %575 = vmatprep.subr.mxu0 0.0
        %576 = vmatpush1.msra.mxu0 0.0
        %577 = vmatprep.subr.mxu0 0.0
        %578 = vmatpush1.msra.mxu0 0.0
        %579 = vmatprep.subr.mxu0 0.0
        %580 = vmatpush1.msra.mxu0 0.0
        %581 = vmatprep.subr.mxu0 0.0
        %582 = vmatpush1.msra.mxu0 0.0
        %583 = vmatprep.subr.mxu0 0.0
        %584 = vmatpush1.msra.mxu0 0.0
        %585 = vmatprep.subr.mxu0 0.0
        %586 = vmatpush1.msra.mxu0 %v549
        %587 = vmatprep.subr.mxu0 0.0
        %588 = vmatpush1.msra.mxu0 %v548
        %589 = vmatprep.subr.mxu0 0.0
        %590 = vmatpush1.msra.mxu0 %v547
        %591 = vmatprep.subr.mxu0 0.0
        %592 = vmatpush1.msra.mxu0 %v546
        %593 = vmatprep.subr.mxu0 0.0
        %594 = vmatpush1.msra.mxu0 %v545
        %595 = vmatprep.subr.mxu0 0.0
        %596 = vmatpush1.msra.mxu0 %v544
        %597 = vmatprep.subr.mxu0 0.0
        %598 = vmatpush1.msra.mxu0 %v543
        %599 = vmatprep.subr.mxu0 0.0
        %600 = vmatpush1.msra.mxu0 %v542
        %601 = vmatprep.subr.mxu0 0.0
        %602 = vmatpush2.msra.mxu0 0.0
        %603 = vmatprep.subr.mxu0 0.0
        %604 = vmatpush2.msra.mxu0 0.0
        %605 = vmatprep.subr.mxu0 0.0
        %606 = vmatpush2.msra.mxu0 0.0
        %607 = vmatprep.subr.mxu0 0.0
        %608 = vmatpush2.msra.mxu0 0.0
        %609 = vmatprep.subr.mxu0 0.0
        %610 = vmatpush2.msra.mxu0 0.0
        %611 = vmatprep.subr.mxu0 0.0
        %612 = vmatpush2.msra.mxu0 0.0
        %613 = vmatprep.subr.mxu0 0.0
        %614 = vmatpush2.msra.mxu0 0.0
        %615 = vmatprep.subr.mxu0 0.0
        %616 = vmatpush2.msra.mxu0 0.0
        %617 = vmatprep.subr.mxu0 0.0
        %618 = vmatpush2.msra.mxu0 0.0
        %619 = vmatprep.subr.mxu0 0.0
        %620 = vmatpush2.msra.mxu0 0.0
        %621 = vmatprep.subr.mxu0 0.0
        %622 = vmatpush2.msra.mxu0 0.0
        %623 = vmatprep.subr.mxu0 0.0
        %624 = vmatpush2.msra.mxu0 0.0
        %625 = vmatprep.subr.mxu0 0.0
        %626 = vmatpush2.msra.mxu0 0.0
        %627 = vmatprep.subr.mxu0 0.0
        %628 = vmatpush2.msra.mxu0 0.0
        %629 = vmatprep.subr.mxu0 0.0
        %630 = vmatpush2.msra.mxu0 0.0
        %631 = vmatprep.subr.mxu0 0.0
        %632 = vmatpush2.msra.mxu0 0.0
        %633 = vmatprep.mubr.f32.mxu0 0.0
        %634 = vmatmul.mubr.f32.gmra.mxu0 %v558
        %v635 = vpop.f32.mrf.mxu0
        %v636 = vadd.f32 %v555, %v635
        %v637 = vpop.f32.mrf.mxu0
        %638 = vmatprep.mubr.f32.mxu0 0.0
        %639 = vmatmul.mubr.f32.gmra.mxu0 %v561
        %v640 = vpop.f32.mrf.mxu0
        %v641 = vadd.f32 %v555, %v640
        %v642 = vpop.f32.mrf.mxu0
        %643 = vmatprep.mubr.f32.mxu0 0.0
        %644 = vmatmul.mubr.f32.gmra.mxu0 %v564
        %v645 = vpop.f32.mrf.mxu0
        %v646 = vadd.f32 %v555, %v645
        %v647 = vpop.f32.mrf.mxu0
        %648 = vmatprep.mubr.f32.mxu0 0.0
        %649 = vmatmul.mubr.f32.gmra.mxu0 %v567
        %v650 = vpop.f32.mrf.mxu0
        %v651 = vadd.f32 %v555, %v650
        %v652 = vpop.f32.mrf.mxu0
        %653 = vdwg.mxu0
        %v654 = vlaneseq
        %v655 = vand.u32 %v654, 127
        %vm656 = vcmp.lt.s32.totalorder %v655, 8
        %v657 = vsel %vm656, %v636, -1e+30
        %v658 = vsel %vm656, %v641, -1e+30
        %v659 = vsel %vm656, %v646, -1e+30
        %v660 = vsel %vm656, %v651, -1e+30
        %661 = vmax.xlane.f32.xlu0 %v657
        %v662 = vpop.xlane.xlu0 %661
        %663 = vmax.xlane.f32.xlu0 %v658
        %v664 = vpop.xlane.xlu0 %663
        %665 = vmax.xlane.f32.xlu0 %v659
        %v666 = vpop.xlane.xlu0 %665
        %667 = vmax.xlane.f32.xlu0 %v660
        %v668 = vpop.xlane.xlu0 %667
        %v669 = vsub.f32 %v657, %v662
        %v670 = vsub.f32 %v658, %v664
        %v671 = vsub.f32 %v659, %v666
        %v672 = vsub.f32 %v660, %v668
        %v673 = vmul.f32 %v669, 1.442695
        %v674 = vpow.pop %v673
        %v675 = vmul.f32 %v670, 1.442695
        %v676 = vpow.pop %v675
        %v677 = vmul.f32 %v671, 1.442695
        %v678 = vpow.pop %v677
        %v679 = vmul.f32 %v672, 1.442695
        %v680 = vpow.pop %v679
        %681 = vadd.xlane.f32.xlu0 %v674
        %v682 = vpop.xlane.xlu0 %681
        %683 = vadd.xlane.f32.xlu0 %v676
        %v684 = vpop.xlane.xlu0 %683
        %685 = vadd.xlane.f32.xlu0 %v678
        %v686 = vpop.xlane.xlu0 %685
        %687 = vadd.xlane.f32.xlu0 %v680
        %v688 = vpop.xlane.xlu0 %687
        %v689 = vlog2.pop %v682
        %v690 = vmul.f32 %v689, 0.6931472
        %v691 = vlog2.pop %v684
        %v692 = vmul.f32 %v691, 0.6931472
        %v693 = vlog2.pop %v686
        %v694 = vmul.f32 %v693, 0.6931472
        %v695 = vlog2.pop %v688
        %v696 = vmul.f32 %v695, 0.6931472
        %v697 = vsub.f32 %v669, %v690
        %v698 = vsub.f32 %v670, %v692
        %v699 = vsub.f32 %v671, %v694
        %v700 = vsub.f32 %v672, %v696
        %701 = vst [vmem:[%s298] sm:$0xff] %v697
        %702 = vst [vmem:[%s298 + $0x8] sm:$0xff] %v698
        %703 = vst [vmem:[%s298 + $0x10] sm:$0xff] %v699
        %704 = vst [vmem:[%s298 + $0x18] sm:$0xff] %v700
      $region52: #{gcn_fa_forward.1} parent=43 // pred_fallthru
        _
      %s705 = smul.u32 4, %s21
      %p706 = scmp.lt.s32.totalorder %s705, 7
      %s707 = scalar_select %p706, %s705, 7
      %s708 = smul.addr %s707, 8
      %s709 = scalar_lea.vmem %s6, %s708
      // Predicated region
      $region53: #{gcn_fa_forward.1} parent=43 // pred_check
        %p710 = pneg %p185
      $region54: #{gcn_fa_forward.1} parent=43 // pred_check_branch
        %712 = sbr.rel (%p710) target = $region56
      $region55: #{gcn_fa_forward.1} parent=43 // pred_region
        %s713 = smul.u32 4, %s21
      $region56: #{gcn_fa_forward.1} parent=43 // pred_fallthru
        _
    $region44: #{gcn_fa_forward.1} parent=5 // pred_fallthru
      _
    %p714 = scmp.le.s32.totalorder 2, %s12
    // Predicated region
    $region57: #{gcn_fa_forward.1} parent=5 // pred_check
      %p715 = pneg %p714
    $region58: #{gcn_fa_forward.1} parent=5 // pred_check_branch
      %717 = sbr.rel (%p715) target = $region60
    $region59: #{gcn_fa_forward.1} parent=5 // pred_region
      %s718 = ssub.s32 %s12, 2
      // Predicated region
      $region61: #{gcn_fa_forward.1} parent=59 // pred_check
        %p719 = pneg %p191
      $region62: #{gcn_fa_forward.1} parent=59 // pred_check_branch
        %721 = sbr.rel (%p719) target = $region64
      $region63: #{gcn_fa_forward.1} parent=59 // pred_region
        %s722 = smul.u32 4, %s23
        %p723 = scmp.lt.s32.totalorder %s722, 7
        %s724 = scalar_select %p723, %s722, 7
        %s725 = smul.addr %s724, 8
        %s726 = scalar_lea.vmem %s6, %s725
      $region64: #{gcn_fa_forward.1} parent=59 // pred_fallthru
        _
    $region60: #{gcn_fa_forward.1} parent=5 // pred_fallthru
      _
  $region6: #{gcn_fa_forward.1} parent=0 // loop_footer
    %s16 = sadd.s32 1, %s12
  $region7: #{gcn_fa_forward.1} parent=0 // loop_footer_branch
    %11 = sbr.rel target = $region3
  $region8: #{gcn_fa_forward.1} parent=0 // loop_exit
    _

</llo_original>
